<compile_context>
chip_gen: v5e
topology: v5e:2x2
jax: 0.10.0
libtpu: 0.0.40
codegen_flags: <defaults>
</compile_context>

<pallas_src>
import math

import jax
import jax.numpy as jnp
import numpy as np
from jax.experimental import pallas as pl
from jax.experimental.pallas import tpu as pltpu

_INV_SQRT2 = 0.7071067811865476


def _gelu_exact(x):
    # PyTorch nn.GELU() default (erf-based).
    return 0.5 * x * (1.0 + jax.lax.erf(x * _INV_SQRT2))


# ---------------------------------------------------------------------------
# Fused cascade kernel. One grid step = one lane-slab of N = B*C columns,
# ALL L layers. Ref layout (coarsest scale first):
#   trend_refs[0..L]  : [T_i, N_TILE]  f32
#   param_refs[4L]    : per layer (w1 [T_out,T_in] mm-dtype, b1 [T_out,1] f32,
#                                  w2 [T_out,T_out] mm-dtype, b2 [T_out,1] f32)
#   out_refs[0..L]    : [T_i, N_TILE]  f32
# ---------------------------------------------------------------------------
def _make_cascade_kernel(num_layers):
    L = num_layers

    def kernel(*refs):
        trend_refs = refs[:L + 1]
        param_refs = refs[L + 1:L + 1 + 4 * L]
        out_refs = refs[L + 1 + 4 * L:]

        # Coarsest trend; already time-major with batch*channel on lanes.
        x = trend_refs[0][...].astype(jnp.float32)              # [T_L, N]
        out_refs[0][...] = x.astype(out_refs[0].dtype)

        for i in range(L):
            w1 = param_refs[4 * i][...]                          # [T_out, T_in]
            b1 = param_refs[4 * i + 1][...]                      # [T_out, 1] f32
            w2 = param_refs[4 * i + 2][...]                      # [T_out, T_out]
            b2 = param_refs[4 * i + 3][...]                      # [T_out, 1] f32

            # Single big MXU matmul per linear layer: M=T_out, K=T_in, N=B_TILE*C.
            h = jnp.dot(w1, x.astype(w1.dtype),
                        preferred_element_type=jnp.float32) + b1
            h = _gelu_exact(h)                                   # f32 epilogue
            h = jnp.dot(w2, h.astype(w2.dtype),
                        preferred_element_type=jnp.float32) + b2
            # Residual with the next-finer trend; running value stays in VMEM.
            x = trend_refs[i + 1][...].astype(jnp.float32) + h
            out_refs[i + 1][...] = x.astype(out_refs[i + 1].dtype)

    return kernel


# ---------------------------------------------------------------------------
# Wrapper mirroring MultiScaleTrendMixing.forward
#   trend_list : [ [B,C,seq], [B,C,seq//w], ..., [B,C,seq//w**L] ]  (finest first)
#   returns    : [ [B,T_i,C] for i=0..L ]                           (finest first)
# ---------------------------------------------------------------------------
def multi_scale_trend_mixing(trend_list, params, matmul_dtype=jnp.bfloat16):
    rev = list(reversed(trend_list))                    # coarsest first
    L = len(rev) - 1
    B, C, _ = rev[0].shape
    t_sizes = [int(t.shape[2]) for t in rev]            # coarsest first
    out_dtype = rev[0].dtype
    itemsize = jnp.dtype(out_dtype).itemsize
    N = B * C

    # --- layout plumbing (XLA side): [B, C, T] -> [T, B*C] --------------------
    trends_2d = [jnp.transpose(t, (2, 0, 1)).reshape(ts, N)
                 for t, ts in zip(rev, t_sizes)]

    flat_params = []
    for (w1, b1, w2, b2) in params:
        flat_params += [w1.astype(matmul_dtype),
                        b1.reshape(-1, 1).astype(jnp.float32),
                        w2.astype(matmul_dtype),
                        b2.reshape(-1, 1).astype(jnp.float32)]
    param_bytes = sum(int(np.prod(p.shape)) * jnp.dtype(p.dtype).itemsize
                      for p in flat_params)

    # --- generation-aware VMEM budget -----------------------------------------
    try:
        vmem_cap = int(pltpu.get_tpu_info().vmem_capacity_bytes)
        vmem_budget = min(vmem_cap * 3 // 4, 100 << 20)   # ~48MiB v7x, ~96MiB v5e/v6e
    except Exception:
        vmem_budget = 48 << 20                            # safe on every generation

    # --- pick the N (lane) tile -----------------------------------------------
    sum_t = sum(t_sizes)
    max_t = max(t_sizes)
    col_bytes = sum_t * itemsize * 2 * 2                  # in+out blocks, double-buffered
    avail = max(vmem_budget - 2 * param_bytes - (4 << 20), col_bytes * 128)
    vreg_cap = max(128, (128 << 10) // (4 * max_t))       # keep biggest f32 temp ~128 KiB
    n_tile = int(min(N, avail // col_bytes, vreg_cap))
    if n_tile < N:
        n_tile = max(128, (n_tile // 128) * 128)          # lane-dense stores
    n_tile = int(min(n_tile, N))
    grid = (int(pl.cdiv(N, n_tile)),)

    # --- advisory cost estimate ------------------------------------------------
    flops = 0
    transcendentals = 0
    for i in range(L):
        t_in, t_out = t_sizes[i], t_sizes[i + 1]
        flops += 2 * N * (t_in * t_out + t_out * t_out)
        transcendentals += N * t_out
    bytes_accessed = 2 * sum_t * N * itemsize + param_bytes

    # --- specs ------------------------------------------------------------------
    trend_specs = [pl.BlockSpec((ts, n_tile), lambda n: (0, n)) for ts in t_sizes]
    out_specs = tuple(pl.BlockSpec((ts, n_tile), lambda n: (0, n)) for ts in t_sizes)
    out_shapes = tuple(jax.ShapeDtypeStruct((ts, N), out_dtype) for ts in t_sizes)

    def _param_specs(single_buffer):
        specs = []
        for p in flat_params:
            if single_buffer:
                # constant index map -> fetched once; one buffer is enough.
                specs.append(pl.BlockSpec(p.shape, lambda n: (0, 0),
                                          pipeline_mode=pl.Buffered(1)))
            else:
                specs.append(pl.BlockSpec(p.shape, lambda n: (0, 0)))
        return specs

    def _run(single_buffer):
        fused = pl.pallas_call(
            _make_cascade_kernel(L),
            out_shape=out_shapes,
            grid=grid,
            in_specs=trend_specs + _param_specs(single_buffer),
            out_specs=out_specs,
            compiler_params=pltpu.CompilerParams(
                dimension_semantics=("parallel",),
                vmem_limit_bytes=int(vmem_budget),
            ),
            cost_estimate=pl.CostEstimate(
                flops=int(flops),
                transcendentals=int(transcendentals),
                bytes_accessed=int(bytes_accessed),
            ),
        )
        return fused(*trends_2d, *flat_params)

    try:
        outs_2d = _run(single_buffer=True)
    except Exception:
        # TODO(synk): pl.Buffered(1) unsupported on this JAX version -> params
        # fall back to default double buffering (slightly more VMEM, same math).
        outs_2d = _run(single_buffer=False)

    # --- [T, B*C] -> [B, T, C], finest first like the reference module ----------
    outs = [jnp.transpose(o.reshape(ts, B, C), (1, 0, 2))
            for o, ts in zip(outs_2d, t_sizes)]
    return list(reversed(outs))


# ---------------------------------------------------------------------------
# Parameter construction (deterministic; matches nn.Linear shapes/init).
# Weights are stored PyTorch-style [out_features, in_features] because the
# kernel computes W @ X with X in [T, B*C] layout.
# ---------------------------------------------------------------------------
def init_params(seq_len, down_sampling_window, down_sampling_layers, key):
    params = []
    L = down_sampling_layers
    for j in range(L):
        t_in = seq_len // down_sampling_window ** (L - j)
        t_out = seq_len // down_sampling_window ** (L - 1 - j)
        key, k1, k2, k3, k4 = jax.random.split(key, 5)
        s1 = 1.0 / math.sqrt(t_in)
        s2 = 1.0 / math.sqrt(t_out)
        w1 = jax.random.uniform(k1, (t_out, t_in), jnp.float32, -s1, s1)
        b1 = jax.random.uniform(k2, (t_out,), jnp.float32, -s1, s1)
        w2 = jax.random.uniform(k3, (t_out, t_out), jnp.float32, -s2, s2)
        b2 = jax.random.uniform(k4, (t_out,), jnp.float32, -s2, s2)
        params.append((w1, b1, w2, b2))
    return params


# ---------------------------------------------------------------------------
# Pure-JAX reference (mirrors the PyTorch forward).  matmul_dtype lets us build
# a bit-consistent reference for the bf16-operand kernel as well as a full-f32
# reference (HIGHEST precision so XLA does not silently truncate to bf16).
# ---------------------------------------------------------------------------
def _reference(trend_list, params, matmul_dtype=jnp.float32):
    rev = list(reversed(trend_list))
    out_low = rev[0]
    out_high = rev[1]
    outs = [jnp.transpose(out_low, (0, 2, 1))]
    hi = jax.lax.Precision.HIGHEST
    for i in range(len(rev) - 1):
        w1, b1, w2, b2 = params[i]
        h = jnp.einsum('bct,ot->bco',
                       out_low.astype(matmul_dtype), w1.astype(matmul_dtype),
                       preferred_element_type=jnp.float32, precision=hi) + b1
        h = _gelu_exact(h)
        h = jnp.einsum('bco,po->bcp',
                       h.astype(matmul_dtype), w2.astype(matmul_dtype),
                       preferred_element_type=jnp.float32, precision=hi) + b2
        out_high = out_high + h
        out_low = out_high
        if i + 2 <= len(rev) - 1:
            out_high = rev[i + 2]
        outs.append(jnp.transpose(out_low, (0, 2, 1)))
    outs.reverse()
    return outs


if __name__ == "__main__":
    # configs: seq_len=16, down_sampling_window=2, down_sampling_layers=2
    seq_len = 16
    down_sampling_window = 2
    down_sampling_layers = 2
    B, C = 2, 4                                 # batch, d_model/channels

    key = jax.random.PRNGKey(0)
    key, kp = jax.random.split(key)
    params = init_params(seq_len, down_sampling_window, down_sampling_layers, kp)

    trend_list = []
    for i in range(down_sampling_layers + 1):
        t = seq_len // down_sampling_window ** i
        key, kx = jax.random.split(key)
        trend_list.append(jax.random.normal(kx, (B, C, t), jnp.float32))

    outs = multi_scale_trend_mixing(trend_list, params)
    outs = [jax.block_until_ready(o) for o in outs]

    # sanity 1: output shapes are [B, T_i, C], finest first
    expected = [(B, seq_len // down_sampling_window ** i, C)
                for i in range(down_sampling_layers + 1)]
    assert [tuple(o.shape) for o in outs] == expected, \
        f"shape mismatch: {[o.shape for o in outs]} vs {expected}"

    # sanity 2 (tight): reference with the SAME bf16 matmul-operand rounding.
    refs_bf16 = _reference(trend_list, params, jnp.bfloat16)
    for o, r in zip(outs, refs_bf16):
        np.testing.assert_allclose(np.asarray(o), np.asarray(r),
                                   rtol=1e-2, atol=1e-2)

    # sanity 3: end-to-end fidelity vs the full-f32 reference (bounds the total
    # error introduced by bf16 matmul operands).
    refs_f32 = _reference(trend_list, params, jnp.float32)
    for o, r in zip(outs, refs_f32):
        np.testing.assert_allclose(np.asarray(o), np.asarray(r),
                                   rtol=5e-2, atol=5e-2)

    print("KERNEL_OK")
</pallas_src>

<mosaic_0001>
module attributes {stable_mosaic.version = 11 : i64} {
  func.func @kernel(%arg0: i32, %arg1: memref<4x8xf32, #tpu.memory_space<vmem>>, %arg2: memref<8x8xf32, #tpu.memory_space<vmem>>, %arg3: memref<16x8xf32, #tpu.memory_space<vmem>>, %arg4: memref<8x4xbf16, #tpu.memory_space<vmem>>, %arg5: memref<8x1xf32, #tpu.memory_space<vmem>>, %arg6: memref<8x8xbf16, #tpu.memory_space<vmem>>, %arg7: memref<8x1xf32, #tpu.memory_space<vmem>>, %arg8: memref<16x8xbf16, #tpu.memory_space<vmem>>, %arg9: memref<16x1xf32, #tpu.memory_space<vmem>>, %arg10: memref<16x16xbf16, #tpu.memory_space<vmem>>, %arg11: memref<16x1xf32, #tpu.memory_space<vmem>>, %arg12: memref<4x8xf32, #tpu.memory_space<vmem>>, %arg13: memref<8x8xf32, #tpu.memory_space<vmem>>, %arg14: memref<16x8xf32, #tpu.memory_space<vmem>>) attributes {dimension_semantics = [#tpu.dimension_semantics<parallel>], iteration_bounds = array<i64: 1>, scalar_prefetch = 0 : i64, scratch_operands = 0 : i64, tpu.core_type = #tpu.core_type<tc>, window_params = [{transform_indices = @transform_0, window_bounds = array<i64: 4, 8>}, {transform_indices = @transform_1, window_bounds = array<i64: 8, 8>}, {transform_indices = @transform_2, window_bounds = array<i64: 16, 8>}, {pipeline_mode = #tpu.pipeline_mode<synchronous>, transform_indices = @transform_3, window_bounds = array<i64: 8, 4>}, {pipeline_mode = #tpu.pipeline_mode<synchronous>, transform_indices = @transform_4, window_bounds = array<i64: 8, 1>}, {pipeline_mode = #tpu.pipeline_mode<synchronous>, transform_indices = @transform_5, window_bounds = array<i64: 8, 8>}, {pipeline_mode = #tpu.pipeline_mode<synchronous>, transform_indices = @transform_6, window_bounds = array<i64: 8, 1>}, {pipeline_mode = #tpu.pipeline_mode<synchronous>, transform_indices = @transform_7, window_bounds = array<i64: 16, 8>}, {pipeline_mode = #tpu.pipeline_mode<synchronous>, transform_indices = @transform_8, window_bounds = array<i64: 16, 1>}, {pipeline_mode = #tpu.pipeline_mode<synchronous>, transform_indices = @transform_9, window_bounds = array<i64: 16, 16>}, {pipeline_mode = #tpu.pipeline_mode<synchronous>, transform_indices = @transform_10, window_bounds = array<i64: 16, 1>}, {transform_indices = @transform_11, window_bounds = array<i64: 4, 8>}, {transform_indices = @transform_12, window_bounds = array<i64: 8, 8>}, {transform_indices = @transform_13, window_bounds = array<i64: 16, 8>}]} {
    %c0 = arith.constant 0 : index
    %c0_0 = arith.constant 0 : index
    %0 = vector.load %arg1[%c0, %c0_0] : memref<4x8xf32, #tpu.memory_space<vmem>>, vector<4x8xf32>
    %c0_1 = arith.constant 0 : index
    %c0_2 = arith.constant 0 : index
    %1 = vector.load %arg12[%c0_1, %c0_2] : memref<4x8xf32, #tpu.memory_space<vmem>>, vector<4x8xf32>
    tpu.vector_store %arg12[%c0_1, %c0_2], %0 {strides = array<i32>} : memref<4x8xf32, #tpu.memory_space<vmem>>, vector<4x8xf32>,
    %c0_3 = arith.constant 0 : index
    %c0_4 = arith.constant 0 : index
    %2 = vector.load %arg4[%c0_3, %c0_4] : memref<8x4xbf16, #tpu.memory_space<vmem>>, vector<8x4xbf16>
    %c0_5 = arith.constant 0 : index
    %c0_6 = arith.constant 0 : index
    %3 = vector.load %arg5[%c0_5, %c0_6] : memref<8x1xf32, #tpu.memory_space<vmem>>, vector<8x1xf32>
    %c0_7 = arith.constant 0 : index
    %c0_8 = arith.constant 0 : index
    %4 = vector.load %arg6[%c0_7, %c0_8] : memref<8x8xbf16, #tpu.memory_space<vmem>>, vector<8x8xbf16>
    %c0_9 = arith.constant 0 : index
    %c0_10 = arith.constant 0 : index
    %5 = vector.load %arg7[%c0_9, %c0_10] : memref<8x1xf32, #tpu.memory_space<vmem>>, vector<8x1xf32>
    %6 = arith.truncf %0 : vector<4x8xf32> to vector<4x8xbf16>
    %cst = arith.constant dense<0.000000e+00> : vector<8x8xf32>
    %7 = tpu.matmul %2, %6, %cst {dimension_numbers = #tpu.dot_dimension_numbers<[1], [0], [0], [1], [0, 0, 1, 1], [], []>} : vector<8x4xbf16>, vector<4x8xbf16>, vector<8x8xf32> -> vector<8x8xf32>
    %8 = vector.broadcast %3 : vector<8x1xf32> to vector<8x8xf32>
    %9 = arith.addf %7, %8 : vector<8x8xf32>
    %cst_11 = arith.constant 5.000000e-01 : f32
    %10 = vector.broadcast %cst_11 : f32 to vector<8x8xf32>
    %11 = arith.mulf %10, %9 : vector<8x8xf32>
    %cst_12 = arith.constant 0.707106769 : f32
    %12 = vector.broadcast %cst_12 : f32 to vector<8x8xf32>
    %13 = arith.mulf %9, %12 : vector<8x8xf32>
    %14 = math.erf %13 : vector<8x8xf32>
    %cst_13 = arith.constant 1.000000e+00 : f32
    %15 = vector.broadcast %cst_13 : f32 to vector<8x8xf32>
    %16 = arith.addf %15, %14 : vector<8x8xf32>
    %17 = arith.mulf %11, %16 : vector<8x8xf32>
    %18 = arith.truncf %17 : vector<8x8xf32> to vector<8x8xbf16>
    %cst_14 = arith.constant dense<0.000000e+00> : vector<8x8xf32>
    %19 = tpu.matmul %4, %18, %cst_14 {dimension_numbers = #tpu.dot_dimension_numbers<[1], [0], [0], [1], [0, 0, 1, 1], [], []>} : vector<8x8xbf16>, vector<8x8xbf16>, vector<8x8xf32> -> vector<8x8xf32>
    %20 = vector.broadcast %5 : vector<8x1xf32> to vector<8x8xf32>
    %21 = arith.addf %19, %20 : vector<8x8xf32>
    %c0_15 = arith.constant 0 : index
    %c0_16 = arith.constant 0 : index
    %22 = vector.load %arg2[%c0_15, %c0_16] : memref<8x8xf32, #tpu.memory_space<vmem>>, vector<8x8xf32>
    %23 = arith.addf %22, %21 : vector<8x8xf32>
    %c0_17 = arith.constant 0 : index
    %c0_18 = arith.constant 0 : index
    %24 = vector.load %arg13[%c0_17, %c0_18] : memref<8x8xf32, #tpu.memory_space<vmem>>, vector<8x8xf32>
    tpu.vector_store %arg13[%c0_17, %c0_18], %23 {strides = array<i32>} : memref<8x8xf32, #tpu.memory_space<vmem>>, vector<8x8xf32>,
    %c0_19 = arith.constant 0 : index
    %c0_20 = arith.constant 0 : index
    %25 = vector.load %arg8[%c0_19, %c0_20] : memref<16x8xbf16, #tpu.memory_space<vmem>>, vector<16x8xbf16>
    %c0_21 = arith.constant 0 : index
    %c0_22 = arith.constant 0 : index
    %26 = vector.load %arg9[%c0_21, %c0_22] : memref<16x1xf32, #tpu.memory_space<vmem>>, vector<16x1xf32>
    %c0_23 = arith.constant 0 : index
    %c0_24 = arith.constant 0 : index
    %27 = vector.load %arg10[%c0_23, %c0_24] : memref<16x16xbf16, #tpu.memory_space<vmem>>, vector<16x16xbf16>
    %c0_25 = arith.constant 0 : index
    %c0_26 = arith.constant 0 : index
    %28 = vector.load %arg11[%c0_25, %c0_26] : memref<16x1xf32, #tpu.memory_space<vmem>>, vector<16x1xf32>
    %29 = arith.truncf %23 : vector<8x8xf32> to vector<8x8xbf16>
    %cst_27 = arith.constant dense<0.000000e+00> : vector<16x8xf32>
    %30 = tpu.matmul %25, %29, %cst_27 {dimension_numbers = #tpu.dot_dimension_numbers<[1], [0], [0], [1], [0, 0, 1, 1], [], []>} : vector<16x8xbf16>, vector<8x8xbf16>, vector<16x8xf32> -> vector<16x8xf32>
    %31 = vector.broadcast %26 : vector<16x1xf32> to vector<16x8xf32>
    %32 = arith.addf %30, %31 : vector<16x8xf32>
    %cst_28 = arith.constant 5.000000e-01 : f32
    %33 = vector.broadcast %cst_28 : f32 to vector<16x8xf32>
    %34 = arith.mulf %33, %32 : vector<16x8xf32>
    %cst_29 = arith.constant 0.707106769 : f32
    %35 = vector.broadcast %cst_29 : f32 to vector<16x8xf32>
    %36 = arith.mulf %32, %35 : vector<16x8xf32>
    %37 = math.erf %36 : vector<16x8xf32>
    %cst_30 = arith.constant 1.000000e+00 : f32
    %38 = vector.broadcast %cst_30 : f32 to vector<16x8xf32>
    %39 = arith.addf %38, %37 : vector<16x8xf32>
    %40 = arith.mulf %34, %39 : vector<16x8xf32>
    %41 = arith.truncf %40 : vector<16x8xf32> to vector<16x8xbf16>
    %cst_31 = arith.constant dense<0.000000e+00> : vector<16x8xf32>
    %42 = tpu.matmul %27, %41, %cst_31 {dimension_numbers = #tpu.dot_dimension_numbers<[1], [0], [0], [1], [0, 0, 1, 1], [], []>} : vector<16x16xbf16>, vector<16x8xbf16>, vector<16x8xf32> -> vector<16x8xf32>
    %43 = vector.broadcast %28 : vector<16x1xf32> to vector<16x8xf32>
    %44 = arith.addf %42, %43 : vector<16x8xf32>
    %c0_32 = arith.constant 0 : index
    %c0_33 = arith.constant 0 : index
    %45 = vector.load %arg3[%c0_32, %c0_33] : memref<16x8xf32, #tpu.memory_space<vmem>>, vector<16x8xf32>
    %46 = arith.addf %45, %44 : vector<16x8xf32>
    %c0_34 = arith.constant 0 : index
    %c0_35 = arith.constant 0 : index
    %47 = vector.load %arg14[%c0_34, %c0_35] : memref<16x8xf32, #tpu.memory_space<vmem>>, vector<16x8xf32>
    tpu.vector_store %arg14[%c0_34, %c0_35], %46 {strides = array<i32>} : memref<16x8xf32, #tpu.memory_space<vmem>>, vector<16x8xf32>,
    return
  }
  func.func @transform_0(%arg0: i32) -> (i32, i32) {
    %c0_i32 = arith.constant 0 : i32
    %c0_i32_0 = arith.constant 0 : i32
    return %c0_i32, %arg0 : i32, i32
  }
  func.func @transform_1(%arg0: i32) -> (i32, i32) {
    %c0_i32 = arith.constant 0 : i32
    %c0_i32_0 = arith.constant 0 : i32
    return %c0_i32, %arg0 : i32, i32
  }
  func.func @transform_2(%arg0: i32) -> (i32, i32) {
    %c0_i32 = arith.constant 0 : i32
    %c0_i32_0 = arith.constant 0 : i32
    return %c0_i32, %arg0 : i32, i32
  }
  func.func @transform_3(%arg0: i32) -> (i32, i32) {
    %c0_i32 = arith.constant 0 : i32
    %c0_i32_0 = arith.constant 0 : i32
    %c0_i32_1 = arith.constant 0 : i32
    return %c0_i32, %c0_i32_0 : i32, i32
  }
  func.func @transform_4(%arg0: i32) -> (i32, i32) {
    %c0_i32 = arith.constant 0 : i32
    %c0_i32_0 = arith.constant 0 : i32
    %c0_i32_1 = arith.constant 0 : i32
    return %c0_i32, %c0_i32_0 : i32, i32
  }
  func.func @transform_5(%arg0: i32) -> (i32, i32) {
    %c0_i32 = arith.constant 0 : i32
    %c0_i32_0 = arith.constant 0 : i32
    %c0_i32_1 = arith.constant 0 : i32
    return %c0_i32, %c0_i32_0 : i32, i32
  }
  func.func @transform_6(%arg0: i32) -> (i32, i32) {
    %c0_i32 = arith.constant 0 : i32
    %c0_i32_0 = arith.constant 0 : i32
    %c0_i32_1 = arith.constant 0 : i32
    return %c0_i32, %c0_i32_0 : i32, i32
  }
  func.func @transform_7(%arg0: i32) -> (i32, i32) {
    %c0_i32 = arith.constant 0 : i32
    %c0_i32_0 = arith.constant 0 : i32
    %c0_i32_1 = arith.constant 0 : i32
    return %c0_i32, %c0_i32_0 : i32, i32
  }
  func.func @transform_8(%arg0: i32) -> (i32, i32) {
    %c0_i32 = arith.constant 0 : i32
    %c0_i32_0 = arith.constant 0 : i32
    %c0_i32_1 = arith.constant 0 : i32
    return %c0_i32, %c0_i32_0 : i32, i32
  }
  func.func @transform_9(%arg0: i32) -> (i32, i32) {
    %c0_i32 = arith.constant 0 : i32
    %c0_i32_0 = arith.constant 0 : i32
    %c0_i32_1 = arith.constant 0 : i32
    return %c0_i32, %c0_i32_0 : i32, i32
  }
  func.func @transform_10(%arg0: i32) -> (i32, i32) {
    %c0_i32 = arith.constant 0 : i32
    %c0_i32_0 = arith.constant 0 : i32
    %c0_i32_1 = arith.constant 0 : i32
    return %c0_i32, %c0_i32_0 : i32, i32
  }
  func.func @transform_11(%arg0: i32) -> (i32, i32) {
    %c0_i32 = arith.constant 0 : i32
    %c0_i32_0 = arith.constant 0 : i32
    return %c0_i32, %arg0 : i32, i32
  }
  func.func @transform_12(%arg0: i32) -> (i32, i32) {
    %c0_i32 = arith.constant 0 : i32
    %c0_i32_0 = arith.constant 0 : i32
    return %c0_i32, %arg0 : i32, i32
  }
  func.func @transform_13(%arg0: i32) -> (i32, i32) {
    %c0_i32 = arith.constant 0 : i32
    %c0_i32_0 = arith.constant 0 : i32
    return %c0_i32, %arg0 : i32, i32
  }
}

module attributes {stable_mosaic.version = 11 : i64} {
  func.func @kernel(%arg0: i32, %arg1: memref<4x8xf32, #tpu.memory_space<vmem>>, %arg2: memref<8x8xf32, #tpu.memory_space<vmem>>, %arg3: memref<16x8xf32, #tpu.memory_space<vmem>>, %arg4: memref<8x4xbf16, #tpu.memory_space<vmem>>, %arg5: memref<8x1xf32, #tpu.memory_space<vmem>>, %arg6: memref<8x8xbf16, #tpu.memory_space<vmem>>, %arg7: memref<8x1xf32, #tpu.memory_space<vmem>>, %arg8: memref<16x8xbf16, #tpu.memory_space<vmem>>, %arg9: memref<16x1xf32, #tpu.memory_space<vmem>>, %arg10: memref<16x16xbf16, #tpu.memory_space<vmem>>, %arg11: memref<16x1xf32, #tpu.memory_space<vmem>>, %arg12: memref<4x8xf32, #tpu.memory_space<vmem>>, %arg13: memref<8x8xf32, #tpu.memory_space<vmem>>, %arg14: memref<16x8xf32, #tpu.memory_space<vmem>>) attributes {dimension_semantics = [#tpu.dimension_semantics<parallel>], iteration_bounds = array<i64: 1>, scalar_prefetch = 0 : i64, scratch_operands = 0 : i64, tpu.core_type = #tpu.core_type<tc>, window_params = [{transform_indices = @transform_0, window_bounds = array<i64: 4, 8>}, {transform_indices = @transform_1, window_bounds = array<i64: 8, 8>}, {transform_indices = @transform_2, window_bounds = array<i64: 16, 8>}, {pipeline_mode = #tpu.pipeline_mode<synchronous>, transform_indices = @transform_3, window_bounds = array<i64: 8, 4>}, {pipeline_mode = #tpu.pipeline_mode<synchronous>, transform_indices = @transform_4, window_bounds = array<i64: 8, 1>}, {pipeline_mode = #tpu.pipeline_mode<synchronous>, transform_indices = @transform_5, window_bounds = array<i64: 8, 8>}, {pipeline_mode = #tpu.pipeline_mode<synchronous>, transform_indices = @transform_6, window_bounds = array<i64: 8, 1>}, {pipeline_mode = #tpu.pipeline_mode<synchronous>, transform_indices = @transform_7, window_bounds = array<i64: 16, 8>}, {pipeline_mode = #tpu.pipeline_mode<synchronous>, transform_indices = @transform_8, window_bounds = array<i64: 16, 1>}, {pipeline_mode = #tpu.pipeline_mode<synchronous>, transform_indices = @transform_9, window_bounds = array<i64: 16, 16>}, {pipeline_mode = #tpu.pipeline_mode<synchronous>, transform_indices = @transform_10, window_bounds = array<i64: 16, 1>}, {transform_indices = @transform_11, window_bounds = array<i64: 4, 8>}, {transform_indices = @transform_12, window_bounds = array<i64: 8, 8>}, {transform_indices = @transform_13, window_bounds = array<i64: 16, 8>}]} {
    %c0 = arith.constant 0 : index
    %c0_0 = arith.constant 0 : index
    %0 = vector.load %arg1[%c0, %c0_0] : memref<4x8xf32, #tpu.memory_space<vmem>>, vector<4x8xf32>
    %c0_1 = arith.constant 0 : index
    %c0_2 = arith.constant 0 : index
    %1 = vector.load %arg12[%c0_1, %c0_2] : memref<4x8xf32, #tpu.memory_space<vmem>>, vector<4x8xf32>
    tpu.vector_store %arg12[%c0_1, %c0_2], %0 {strides = array<i32>} : memref<4x8xf32, #tpu.memory_space<vmem>>, vector<4x8xf32>,
    %c0_3 = arith.constant 0 : index
    %c0_4 = arith.constant 0 : index
    %2 = vector.load %arg4[%c0_3, %c0_4] : memref<8x4xbf16, #tpu.memory_space<vmem>>, vector<8x4xbf16>
    %c0_5 = arith.constant 0 : index
    %c0_6 = arith.constant 0 : index
    %3 = vector.load %arg5[%c0_5, %c0_6] : memref<8x1xf32, #tpu.memory_space<vmem>>, vector<8x1xf32>
    %c0_7 = arith.constant 0 : index
    %c0_8 = arith.constant 0 : index
    %4 = vector.load %arg6[%c0_7, %c0_8] : memref<8x8xbf16, #tpu.memory_space<vmem>>, vector<8x8xbf16>
    %c0_9 = arith.constant 0 : index
    %c0_10 = arith.constant 0 : index
    %5 = vector.load %arg7[%c0_9, %c0_10] : memref<8x1xf32, #tpu.memory_space<vmem>>, vector<8x1xf32>
    %6 = arith.truncf %0 : vector<4x8xf32> to vector<4x8xbf16>
    %cst = arith.constant dense<0.000000e+00> : vector<8x8xf32>
    %7 = tpu.matmul %2, %6, %cst {dimension_numbers = #tpu.dot_dimension_numbers<[1], [0], [0], [1], [0, 0, 1, 1], [], []>} : vector<8x4xbf16>, vector<4x8xbf16>, vector<8x8xf32> -> vector<8x8xf32>
    %8 = vector.broadcast %3 : vector<8x1xf32> to vector<8x8xf32>
    %9 = arith.addf %7, %8 : vector<8x8xf32>
    %cst_11 = arith.constant 5.000000e-01 : f32
    %10 = vector.broadcast %cst_11 : f32 to vector<8x8xf32>
    %11 = arith.mulf %10, %9 : vector<8x8xf32>
    %cst_12 = arith.constant 0.707106769 : f32
    %12 = vector.broadcast %cst_12 : f32 to vector<8x8xf32>
    %13 = arith.mulf %9, %12 : vector<8x8xf32>
    %14 = math.erf %13 : vector<8x8xf32>
    %cst_13 = arith.constant 1.000000e+00 : f32
    %15 = vector.broadcast %cst_13 : f32 to vector<8x8xf32>
    %16 = arith.addf %15, %14 : vector<8x8xf32>
    %17 = arith.mulf %11, %16 : vector<8x8xf32>
    %18 = arith.truncf %17 : vector<8x8xf32> to vector<8x8xbf16>
    %cst_14 = arith.constant dense<0.000000e+00> : vector<8x8xf32>
    %19 = tpu.matmul %4, %18, %cst_14 {dimension_numbers = #tpu.dot_dimension_numbers<[1], [0], [0], [1], [0, 0, 1, 1], [], []>} : vector<8x8xbf16>, vector<8x8xbf16>, vector<8x8xf32> -> vector<8x8xf32>
    %20 = vector.broadcast %5 : vector<8x1xf32> to vector<8x8xf32>
    %21 = arith.addf %19, %20 : vector<8x8xf32>
    %c0_15 = arith.constant 0 : index
    %c0_16 = arith.constant 0 : index
    %22 = vector.load %arg2[%c0_15, %c0_16] : memref<8x8xf32, #tpu.memory_space<vmem>>, vector<8x8xf32>
    %23 = arith.addf %22, %21 : vector<8x8xf32>
    %c0_17 = arith.constant 0 : index
    %c0_18 = arith.constant 0 : index
    %24 = vector.load %arg13[%c0_17, %c0_18] : memref<8x8xf32, #tpu.memory_space<vmem>>, vector<8x8xf32>
    tpu.vector_store %arg13[%c0_17, %c0_18], %23 {strides = array<i32>} : memref<8x8xf32, #tpu.memory_space<vmem>>, vector<8x8xf32>,
    %c0_19 = arith.constant 0 : index
    %c0_20 = arith.constant 0 : index
    %25 = vector.load %arg8[%c0_19, %c0_20] : memref<16x8xbf16, #tpu.memory_space<vmem>>, vector<16x8xbf16>
    %c0_21 = arith.constant 0 : index
    %c0_22 = arith.constant 0 : index
    %26 = vector.load %arg9[%c0_21, %c0_22] : memref<16x1xf32, #tpu.memory_space<vmem>>, vector<16x1xf32>
    %c0_23 = arith.constant 0 : index
    %c0_24 = arith.constant 0 : index
    %27 = vector.load %arg10[%c0_23, %c0_24] : memref<16x16xbf16, #tpu.memory_space<vmem>>, vector<16x16xbf16>
    %c0_25 = arith.constant 0 : index
    %c0_26 = arith.constant 0 : index
    %28 = vector.load %arg11[%c0_25, %c0_26] : memref<16x1xf32, #tpu.memory_space<vmem>>, vector<16x1xf32>
    %29 = arith.truncf %23 : vector<8x8xf32> to vector<8x8xbf16>
    %cst_27 = arith.constant dense<0.000000e+00> : vector<16x8xf32>
    %30 = tpu.matmul %25, %29, %cst_27 {dimension_numbers = #tpu.dot_dimension_numbers<[1], [0], [0], [1], [0, 0, 1, 1], [], []>} : vector<16x8xbf16>, vector<8x8xbf16>, vector<16x8xf32> -> vector<16x8xf32>
    %31 = vector.broadcast %26 : vector<16x1xf32> to vector<16x8xf32>
    %32 = arith.addf %30, %31 : vector<16x8xf32>
    %cst_28 = arith.constant 5.000000e-01 : f32
    %33 = vector.broadcast %cst_28 : f32 to vector<16x8xf32>
    %34 = arith.mulf %33, %32 : vector<16x8xf32>
    %cst_29 = arith.constant 0.707106769 : f32
    %35 = vector.broadcast %cst_29 : f32 to vector<16x8xf32>
    %36 = arith.mulf %32, %35 : vector<16x8xf32>
    %37 = math.erf %36 : vector<16x8xf32>
    %cst_30 = arith.constant 1.000000e+00 : f32
    %38 = vector.broadcast %cst_30 : f32 to vector<16x8xf32>
    %39 = arith.addf %38, %37 : vector<16x8xf32>
    %40 = arith.mulf %34, %39 : vector<16x8xf32>
    %41 = arith.truncf %40 : vector<16x8xf32> to vector<16x8xbf16>
    %cst_31 = arith.constant dense<0.000000e+00> : vector<16x8xf32>
    %42 = tpu.matmul %27, %41, %cst_31 {dimension_numbers = #tpu.dot_dimension_numbers<[1], [0], [0], [1], [0, 0, 1, 1], [], []>} : vector<16x16xbf16>, vector<16x8xbf16>, vector<16x8xf32> -> vector<16x8xf32>
    %43 = vector.broadcast %28 : vector<16x1xf32> to vector<16x8xf32>
    %44 = arith.addf %42, %43 : vector<16x8xf32>
    %c0_32 = arith.constant 0 : index
    %c0_33 = arith.constant 0 : index
    %45 = vector.load %arg3[%c0_32, %c0_33] : memref<16x8xf32, #tpu.memory_space<vmem>>, vector<16x8xf32>
    %46 = arith.addf %45, %44 : vector<16x8xf32>
    %c0_34 = arith.constant 0 : index
    %c0_35 = arith.constant 0 : index
    %47 = vector.load %arg14[%c0_34, %c0_35] : memref<16x8xf32, #tpu.memory_space<vmem>>, vector<16x8xf32>
    tpu.vector_store %arg14[%c0_34, %c0_35], %46 {strides = array<i32>} : memref<16x8xf32, #tpu.memory_space<vmem>>, vector<16x8xf32>,
    return
  }
  func.func @transform_0(%arg0: i32) -> (i32, i32) {
    %c0_i32 = arith.constant 0 : i32
    %c0_i32_0 = arith.constant 0 : i32
    return %c0_i32, %arg0 : i32, i32
  }
  func.func @transform_1(%arg0: i32) -> (i32, i32) {
    %c0_i32 = arith.constant 0 : i32
    %c0_i32_0 = arith.constant 0 : i32
    return %c0_i32, %arg0 : i32, i32
  }
  func.func @transform_2(%arg0: i32) -> (i32, i32) {
    %c0_i32 = arith.constant 0 : i32
    %c0_i32_0 = arith.constant 0 : i32
    return %c0_i32, %arg0 : i32, i32
  }
  func.func @transform_3(%arg0: i32) -> (i32, i32) {
    %c0_i32 = arith.constant 0 : i32
    %c0_i32_0 = arith.constant 0 : i32
    %c0_i32_1 = arith.constant 0 : i32
    return %c0_i32, %c0_i32_0 : i32, i32
  }
  func.func @transform_4(%arg0: i32) -> (i32, i32) {
    %c0_i32 = arith.constant 0 : i32
    %c0_i32_0 = arith.constant 0 : i32
    %c0_i32_1 = arith.constant 0 : i32
    return %c0_i32, %c0_i32_0 : i32, i32
  }
  func.func @transform_5(%arg0: i32) -> (i32, i32) {
    %c0_i32 = arith.constant 0 : i32
    %c0_i32_0 = arith.constant 0 : i32
    %c0_i32_1 = arith.constant 0 : i32
    return %c0_i32, %c0_i32_0 : i32, i32
  }
  func.func @transform_6(%arg0: i32) -> (i32, i32) {
    %c0_i32 = arith.constant 0 : i32
    %c0_i32_0 = arith.constant 0 : i32
    %c0_i32_1 = arith.constant 0 : i32
    return %c0_i32, %c0_i32_0 : i32, i32
  }
  func.func @transform_7(%arg0: i32) -> (i32, i32) {
    %c0_i32 = arith.constant 0 : i32
    %c0_i32_0 = arith.constant 0 : i32
    %c0_i32_1 = arith.constant 0 : i32
    return %c0_i32, %c0_i32_0 : i32, i32
  }
  func.func @transform_8(%arg0: i32) -> (i32, i32) {
    %c0_i32 = arith.constant 0 : i32
    %c0_i32_0 = arith.constant 0 : i32
    %c0_i32_1 = arith.constant 0 : i32
    return %c0_i32, %c0_i32_0 : i32, i32
  }
  func.func @transform_9(%arg0: i32) -> (i32, i32) {
    %c0_i32 = arith.constant 0 : i32
    %c0_i32_0 = arith.constant 0 : i32
    %c0_i32_1 = arith.constant 0 : i32
    return %c0_i32, %c0_i32_0 : i32, i32
  }
  func.func @transform_10(%arg0: i32) -> (i32, i32) {
    %c0_i32 = arith.constant 0 : i32
    %c0_i32_0 = arith.constant 0 : i32
    %c0_i32_1 = arith.constant 0 : i32
    return %c0_i32, %c0_i32_0 : i32, i32
  }
  func.func @transform_11(%arg0: i32) -> (i32, i32) {
    %c0_i32 = arith.constant 0 : i32
    %c0_i32_0 = arith.constant 0 : i32
    return %c0_i32, %arg0 : i32, i32
  }
  func.func @transform_12(%arg0: i32) -> (i32, i32) {
    %c0_i32 = arith.constant 0 : i32
    %c0_i32_0 = arith.constant 0 : i32
    return %c0_i32, %arg0 : i32, i32
  }
  func.func @transform_13(%arg0: i32) -> (i32, i32) {
    %c0_i32 = arith.constant 0 : i32
    %c0_i32_0 = arith.constant 0 : i32
    return %c0_i32, %arg0 : i32, i32
  }
}

</mosaic_0001>

<llo_original>
// kernel: tpu_custom_call.1
$region0: #{tpu_custom_call.1}
  #allocation0 [shape = 'u32[]', space=smem, size = 0x4, offset = 0x4, fixed_abs, tag = 'smem constant byte address 0x4 - core index']
  #allocation1 [shape = 'u32[72,128]{1,0:T(1,128)}', space=vmem, size = 0x9000, scoped, tag = 'internal scratch']
  %s0 = inlined_call_operand.vmem [shape: f32[4,8], index: 0, kind: input, shape index: {}]
  %s1 = inlined_call_operand.vmem [shape: f32[8,8], index: 1, kind: input, shape index: {}]
  %s2 = inlined_call_operand.vmem [shape: f32[16,8], index: 2, kind: input, shape index: {}]
  %s3 = inlined_call_operand.vmem [shape: bf16[8,4], index: 3, kind: input, shape index: {}]
  %s4 = inlined_call_operand.vmem [shape: f32[8,1], index: 4, kind: input, shape index: {}]
  %s5 = inlined_call_operand.vmem [shape: bf16[8,8], index: 5, kind: input, shape index: {}]
  %s6 = inlined_call_operand.vmem [shape: f32[8,1], index: 6, kind: input, shape index: {}]
  %s7 = inlined_call_operand.vmem [shape: bf16[16,8], index: 7, kind: input, shape index: {}]
  %s8 = inlined_call_operand.vmem [shape: f32[16,1], index: 8, kind: input, shape index: {}]
  %s9 = inlined_call_operand.vmem [shape: bf16[16,16], index: 9, kind: input, shape index: {}]
  %s10 = inlined_call_operand.vmem [shape: f32[16,1], index: 10, kind: input, shape index: {}]
  %s11 = inlined_call_operand.hbm [shape: f32[4,8], index: 11, kind: output, shape index: {0}]
  %s12 = inlined_call_operand.hbm [shape: f32[8,8], index: 12, kind: output, shape index: {1}]
  %s13 = inlined_call_operand.vmem [shape: f32[16,8], index: 13, kind: output, shape index: {2}]
  %14 = xla_tuple %s11, %s12, %s13
  %s15 = sld [smem:[#allocation0]]
  $region70: #{tpu_custom_call.1} parent=0
    _
  %s17 = ssub.s32 1, %s15
  %s18 = scalar_select 0, %s17, %s15
  $region1: #{tpu_custom_call.1} parent=0
    #allocation2 [shape = 'u8[2048]{0}', space=vmem, size = 0x800, scoped, tag = 'output window, operand 0, single buffered']
    #allocation3 [shape = 's32[1]{0}', space=sflag, size = 0x4, scoped, tag = 'scoped memory for tpu_custom_call.1']
    #allocation4 [shape = 'u8[4096]{0}', space=vmem, size = 0x1000, scoped, tag = 'output window, operand 1, single buffered']
    #allocation5 [shape = 's32[1]{0}', space=sflag, size = 0x4, scoped, tag = 'scoped memory for tpu_custom_call.1']
    %19 = vsyncpa [#allocation3], 0
    %20 = vsyncpa [#allocation5], 0
    // Predicated region
    $region2: #{tpu_custom_call.1} parent=1 // pred_check
      _
    $region3: #{tpu_custom_call.1} parent=1 // pred_check_branch
      %22 = sbr.rel (0) target = $region5
    $region4: #{tpu_custom_call.1} parent=1 // pred_region
      _
    $region5: #{tpu_custom_call.1} parent=1 // pred_fallthru
      _
    // Predicated region
    $region6: #{tpu_custom_call.1} parent=1 // pred_check
      _
    $region7: #{tpu_custom_call.1} parent=1 // pred_check_branch
      %24 = sbr.rel (0) target = $region9
    $region8: #{tpu_custom_call.1} parent=1 // pred_region
      _
    $region9: #{tpu_custom_call.1} parent=1 // pred_fallthru
      _
    // Predicated region
    $region10: #{tpu_custom_call.1} parent=1 // pred_check
      _
    $region11: #{tpu_custom_call.1} parent=1 // pred_check_branch
      %26 = sbr.rel (0) target = $region13
    $region12: #{tpu_custom_call.1} parent=1 // pred_region
      _
    $region13: #{tpu_custom_call.1} parent=1 // pred_fallthru
      _
    // Predicated region
    $region14: #{tpu_custom_call.1} parent=1 // pred_check
      _
    $region15: #{tpu_custom_call.1} parent=1 // pred_check_branch
      %28 = sbr.rel (0) target = $region17
    $region16: #{tpu_custom_call.1} parent=1 // pred_region
      _
    $region17: #{tpu_custom_call.1} parent=1 // pred_fallthru
      _
    // Predicated region
    $region18: #{tpu_custom_call.1} parent=1 // pred_check
      _
    $region19: #{tpu_custom_call.1} parent=1 // pred_check_branch
      %30 = sbr.rel (0) target = $region21
    $region20: #{tpu_custom_call.1} parent=1 // pred_region
      _
    $region21: #{tpu_custom_call.1} parent=1 // pred_fallthru
      _
    // Predicated region
    $region22: #{tpu_custom_call.1} parent=1 // pred_check
      _
    $region23: #{tpu_custom_call.1} parent=1 // pred_check_branch
      %32 = sbr.rel (0) target = $region25
    $region24: #{tpu_custom_call.1} parent=1 // pred_region
      _
    $region25: #{tpu_custom_call.1} parent=1 // pred_fallthru
      _
    // Predicated region
    $region26: #{tpu_custom_call.1} parent=1 // pred_check
      _
    $region27: #{tpu_custom_call.1} parent=1 // pred_check_branch
      %34 = sbr.rel (0) target = $region29
    $region28: #{tpu_custom_call.1} parent=1 // pred_region
      _
    $region29: #{tpu_custom_call.1} parent=1 // pred_fallthru
      _
    // Predicated region
    $region30: #{tpu_custom_call.1} parent=1 // pred_check
      _
    $region31: #{tpu_custom_call.1} parent=1 // pred_check_branch
      %36 = sbr.rel (0) target = $region33
    $region32: #{tpu_custom_call.1} parent=1 // pred_region
      _
    $region33: #{tpu_custom_call.1} parent=1 // pred_fallthru
      _
    // Predicated region
    $region34: #{tpu_custom_call.1} parent=1 // pred_check
      _
    $region35: #{tpu_custom_call.1} parent=1 // pred_check_branch
      %38 = sbr.rel (0) target = $region37
    $region36: #{tpu_custom_call.1} parent=1 // pred_region
      _
    $region37: #{tpu_custom_call.1} parent=1 // pred_fallthru
      _
    // Predicated region
    $region38: #{tpu_custom_call.1} parent=1 // pred_check
      _
    $region39: #{tpu_custom_call.1} parent=1 // pred_check_branch
      %40 = sbr.rel (0) target = $region41
    $region40: #{tpu_custom_call.1} parent=1 // pred_region
      _
    $region41: #{tpu_custom_call.1} parent=1 // pred_fallthru
      _
    // Predicated region
    $region42: #{tpu_custom_call.1} parent=1 // pred_check
      _
    $region43: #{tpu_custom_call.1} parent=1 // pred_check_branch
      %42 = sbr.rel (0) target = $region45
    $region44: #{tpu_custom_call.1} parent=1 // pred_region
      _
    $region45: #{tpu_custom_call.1} parent=1 // pred_fallthru
      _
    %v44 = vld [vmem:[%s0] sm:$0xf]
    %vm45 = vcmask 60416
    %46 = vst.msk [vmem:[#allocation2] sm:$0xf] %vm45, %v44
    %v47 = vld [vmem:[%s3] sm:$0xf]
    %v48 = vld [vmem:[%s4] sm:$0xff]
    %v49 = vld [vmem:[%s5] sm:$0xf]
    %v50 = vld [vmem:[%s6] sm:$0xff]
    %v51 = vpack.c.bf16 %v44, %v44
    %53 = vset.pattern.permute.xlu0 0
    %54 = vperm.xlu0 %53, %v48
    %v55 = vpop.permute.xlu0 %54
    %vm57 = vcmask 31744
    %v59 = vsel %vm57, %v47, 0
    %vm61 = vcmask 1041408
    %v63 = vsel %vm61, %v51, 0
    %65 = vmatpush.bf16.msra.mxu0 0
    %66 = vmatpush.bf16.msra.mxu0 0
    %67 = vmatpush.bf16.msra.mxu0 0
    %68 = vmatpush.bf16.msra.mxu0 0
    %69 = vmatpush.bf16.msra.mxu0 0
    %70 = vmatpush.bf16.msra.mxu0 0
    %71 = vmatpush.bf16.msra.mxu0 0
    %72 = vmatpush.bf16.msra.mxu0 %v63
    %73 = vmatmul.bf16.gmra.mxu0 %v59
    %v74 = vpop.f32.mrf.mxu0
    %v75 = vadd.f32 %v55, %v74
    %v76 = vpop.f32.mrf.mxu0
    %77 = vdwg.mxu0
    %v78 = vmul.f32 %v75, 0.5
    %v79 = vmul.f32 %v75, 0.70710677
    %v80 = vmul.f32 %v79, %v79
    %v81 = vmin.f32 16.0, %v80
    %v82 = vmul.f32 %v81, 2.1237322e-06
    %v83 = vadd.f32 %v82, 0.00028619796
    %v84 = vmul.f32 %v81, %v83
    %v85 = vadd.f32 %v84, 0.0036580483
    %v86 = vmul.f32 %v81, %v85
    %v87 = vadd.f32 %v86, 0.05243302
    %v88 = vmul.f32 %v81, %v87
    %v89 = vadd.f32 %v88, 0.18741608
    %v90 = vmul.f32 %v81, %v89
    %v91 = vadd.f32 %v90, 1.1283791
    %v92 = vmul.f32 %v79, %v91
    %v93 = vmul.f32 %v81, 3.8918573e-05
    %v94 = vadd.f32 %v93, 0.001143296
    %v95 = vmul.f32 %v81, %v94
    %v96 = vadd.f32 %v95, 0.014752088
    %v97 = vmul.f32 %v81, %v96
    %v98 = vadd.f32 %v97, 0.112945676
    %v99 = vmul.f32 %v81, %v98
    %v100 = vadd.f32 %v99, 0.4994258
    %v101 = vmul.f32 %v81, %v100
    %v102 = vadd.f32 %v101, 1.0
    %v103 = vrcp.pop %v102
    %v104 = vmul.f32 %v102, %v103
    %v105 = vsub.f32 1.0, %v104
    %v106 = vmul.f32 %v103, %v105
    %v107 = vadd.f32 %v103, %v106
    %vm108 = vweird.f32 %v102
    %vm109 = vweird.f32 %v103
    %vm110 = vmor %vm108, %vm109
    %v111 = vsel %vm110, %v103, %v107
    %v112 = vand.u32 2147483647, %v102
    %vm113 = vcmp.eq.f32.partialorder %v112, 8.507059e+37
    %v114 = vand.u32 %v102, 2147483648
    %v115 = vor.u32 1.1754944e-38, %v114
    %v116 = vsel %vm113, %v115, %v111
    %v117 = vmul.f32 %v92, %v116
    %v118 = vmin.f32 %v117, 1.0
    %v119 = vmax.f32 %v118, -1.0
    %v120 = vadd.f32 %v119, 1.0
    %v121 = vmul.f32 %v78, %v120
    %v122 = vpack.c.bf16 %v121, %v121
    %124 = vset.pattern.permute.xlu0 0
    %125 = vperm.xlu0 %124, %v50
    %v126 = vpop.permute.xlu0 %125
    %vm128 = vcmask 64512
    %v130 = vsel %vm128, %v49, 0
    %vm132 = vcmask 1043456
    %v134 = vsel %vm132, %v122, 0
    %136 = vmatpush.bf16.msra.mxu0 0
    %137 = vmatpush.bf16.msra.mxu0 0
    %138 = vmatpush.bf16.msra.mxu0 0
    %139 = vmatpush.bf16.msra.mxu0 0
    %140 = vmatpush.bf16.msra.mxu0 0
    %141 = vmatpush.bf16.msra.mxu0 0
    %142 = vmatpush.bf16.msra.mxu0 0
    %143 = vmatpush.bf16.msra.mxu0 %v134
    %144 = vmatmul.bf16.gmra.mxu0 %v130
    %v145 = vpop.f32.mrf.mxu0
    %v146 = vadd.f32 %v126, %v145
    %v147 = vpop.f32.mrf.mxu0
    %148 = vdwg.mxu0
    %v149 = vld [vmem:[%s1] sm:$0xff]
    %v150 = vadd.f32 %v149, %v146
    %151 = vst.msk [vmem:[#allocation4] sm:$0xff] %vm128, %v150
    %v152 = vld [vmem:[%s7] sm:$0xf]
    %v153 = vld [vmem:[%s7 + $0x4] sm:$0xf]
    %v154 = vld [vmem:[%s8] sm:$0xff]
    %v155 = vld [vmem:[%s8 + $0x8] sm:$0xff]
    %v156 = vld [vmem:[%s9] sm:$0xf]
    %v157 = vld [vmem:[%s9 + $0x4] sm:$0xf]
    %v158 = vld [vmem:[%s10] sm:$0xff]
    %v159 = vld [vmem:[%s10 + $0x8] sm:$0xff]
    %v160 = vpack.c.bf16 %v150, %v150
    %162 = vset.pattern.permute.xlu0 0
    %163 = vperm.xlu0 %162, %v154
    %v164 = vpop.permute.xlu0 %163
    %167 = vset.pattern.permute.xlu0 0
    %168 = vperm.xlu0 %167, %v155
    %v169 = vpop.permute.xlu0 %168
    %v173 = vunpack.c.l.b16 %v152
    %v174 = vunpack.c.l.b16 %v153
    %v175 = vpack.c.b16 %v174, %v173
    %v177 = vsel %vm128, %v175, 0
    %v180 = vsel %vm132, %v160, 0
    %182 = vmatpush.bf16.msra.mxu0 0
    %183 = vmatpush.bf16.msra.mxu0 0
    %184 = vmatpush.bf16.msra.mxu0 0
    %185 = vmatpush.bf16.msra.mxu0 0
    %186 = vmatpush.bf16.msra.mxu0 0
    %187 = vmatpush.bf16.msra.mxu0 0
    %188 = vmatpush.bf16.msra.mxu0 0
    %189 = vmatpush.bf16.msra.mxu0 %v180
    %190 = vmatmul.bf16.gmra.mxu0 %v177
    %v191 = vpop.f32.mrf.mxu0
    %v192 = vadd.f32 %v164, %v191
    %v193 = vpop.f32.mrf.mxu0
    %v194 = vadd.f32 %v169, %v193
    %195 = vdwg.mxu0
    %v196 = vmul.f32 %v192, 0.5
    %v197 = vmul.f32 %v194, 0.5
    %v198 = vmul.f32 %v192, 0.70710677
    %v199 = vmul.f32 %v194, 0.70710677
    %v200 = vmul.f32 %v198, %v198
    %v201 = vmin.f32 16.0, %v200
    %v202 = vmul.f32 %v201, 2.1237322e-06
    %v203 = vadd.f32 %v202, 0.00028619796
    %v204 = vmul.f32 %v201, %v203
    %v205 = vadd.f32 %v204, 0.0036580483
    %v206 = vmul.f32 %v201, %v205
    %v207 = vadd.f32 %v206, 0.05243302
    %v208 = vmul.f32 %v201, %v207
    %v209 = vadd.f32 %v208, 0.18741608
    %v210 = vmul.f32 %v201, %v209
    %v211 = vadd.f32 %v210, 1.1283791
    %v212 = vmul.f32 %v198, %v211
    %v213 = vmul.f32 %v201, 3.8918573e-05
    %v214 = vadd.f32 %v213, 0.001143296
    %v215 = vmul.f32 %v201, %v214
    %v216 = vadd.f32 %v215, 0.014752088
    %v217 = vmul.f32 %v201, %v216
    %v218 = vadd.f32 %v217, 0.112945676
    %v219 = vmul.f32 %v201, %v218
    %v220 = vadd.f32 %v219, 0.4994258
    %v221 = vmul.f32 %v201, %v220
    %v222 = vadd.f32 %v221, 1.0
    %v223 = vrcp.pop %v222
    %v224 = vmul.f32 %v222, %v223
    %v225 = vsub.f32 1.0, %v224
    %v226 = vmul.f32 %v223, %v225
    %v227 = vadd.f32 %v223, %v226
    %vm228 = vweird.f32 %v222
    %vm229 = vweird.f32 %v223
    %vm230 = vmor %vm228, %vm229
    %v231 = vsel %vm230, %v223, %v227
    %v232 = vand.u32 2147483647, %v222
    %vm233 = vcmp.eq.f32.partialorder %v232, 8.507059e+37
    %v234 = vand.u32 %v222, 2147483648
    %v235 = vor.u32 1.1754944e-38, %v234
    %v236 = vsel %vm233, %v235, %v231
    %v237 = vmul.f32 %v212, %v236
    %v238 = vmin.f32 %v237, 1.0
    %v239 = vmax.f32 %v238, -1.0
    %v240 = vmul.f32 %v199, %v199
    %v241 = vmin.f32 16.0, %v240
    %v242 = vmul.f32 %v241, 2.1237322e-06
    %v243 = vadd.f32 %v242, 0.00028619796
    %v244 = vmul.f32 %v241, %v243
    %v245 = vadd.f32 %v244, 0.0036580483
    %v246 = vmul.f32 %v241, %v245
    %v247 = vadd.f32 %v246, 0.05243302
    %v248 = vmul.f32 %v241, %v247
    %v249 = vadd.f32 %v248, 0.18741608
    %v250 = vmul.f32 %v241, %v249
    %v251 = vadd.f32 %v250, 1.1283791
    %v252 = vmul.f32 %v199, %v251
    %v253 = vmul.f32 %v241, 3.8918573e-05
    %v254 = vadd.f32 %v253, 0.001143296
    %v255 = vmul.f32 %v241, %v254
    %v256 = vadd.f32 %v255, 0.014752088
    %v257 = vmul.f32 %v241, %v256
    %v258 = vadd.f32 %v257, 0.112945676
    %v259 = vmul.f32 %v241, %v258
    %v260 = vadd.f32 %v259, 0.4994258
    %v261 = vmul.f32 %v241, %v260
    %v262 = vadd.f32 %v261, 1.0
    %v263 = vrcp.pop %v262
    %v264 = vmul.f32 %v262, %v263
    %v265 = vsub.f32 1.0, %v264
    %v266 = vmul.f32 %v263, %v265
    %v267 = vadd.f32 %v263, %v266
    %vm268 = vweird.f32 %v262
    %vm269 = vweird.f32 %v263
    %vm270 = vmor %vm268, %vm269
    %v271 = vsel %vm270, %v263, %v267
    %v272 = vand.u32 2147483647, %v262
    %vm273 = vcmp.eq.f32.partialorder %v272, 8.507059e+37
    %v274 = vand.u32 %v262, 2147483648
    %v275 = vor.u32 1.1754944e-38, %v274
    %v276 = vsel %vm273, %v275, %v271
    %v277 = vmul.f32 %v252, %v276
    %v278 = vmin.f32 %v277, 1.0
    %v279 = vmax.f32 %v278, -1.0
    %v280 = vadd.f32 %v239, 1.0
    %v281 = vadd.f32 %v279, 1.0
    %v282 = vmul.f32 %v196, %v280
    %v283 = vmul.f32 %v197, %v281
    %v284 = vpack.c.bf16 %v283, %v282
    %286 = vset.pattern.permute.xlu0 0
    %287 = vperm.xlu0 %286, %v158
    %v288 = vpop.permute.xlu0 %287
    %291 = vset.pattern.permute.xlu0 0
    %292 = vperm.xlu0 %291, %v159
    %v293 = vpop.permute.xlu0 %292
    %v297 = vunpack.c.l.b16 %v156
    %v298 = vunpack.c.l.b16 %v157
    %v299 = vpack.c.b16 %v298, %v297
    %vm300 = vcmask 130048
    %v302 = vsel %vm300, %v299, 0
    %304 = vmatpush.bf16.msra.mxu0 0
    %305 = vmatpush.bf16.msra.mxu0 0
    %306 = vmatpush.bf16.msra.mxu0 0
    %307 = vmatpush.bf16.msra.mxu0 0
    %308 = vmatpush.bf16.msra.mxu0 0
    %309 = vmatpush.bf16.msra.mxu0 0
    %310 = vmatpush.bf16.msra.mxu0 0
    %311 = vmatpush.bf16.msra.mxu0 %v284
    %312 = vmatmul.bf16.gmra.mxu0 %v302
    %v313 = vpop.f32.mrf.mxu0
    %v314 = vadd.f32 %v288, %v313
    %v315 = vpop.f32.mrf.mxu0
    %v316 = vadd.f32 %v293, %v315
    %317 = vdwg.mxu0
    %v318 = vld [vmem:[%s2] sm:$0xff]
    %v319 = vld [vmem:[%s2 + $0x8] sm:$0xff]
    %v320 = vadd.f32 %v318, %v314
    %v321 = vadd.f32 %v319, %v316
    %322 = vst.msk [vmem:[%s13] sm:$0xff] %vm128, %v320
    %323 = vst.msk [vmem:[%s13 + $0x8] sm:$0xff] %vm128, %v321
    // Predicated region
    $region46: #{tpu_custom_call.1} parent=1 // pred_check
      _
    $region47: #{tpu_custom_call.1} parent=1 // pred_check_branch
      %325 = sbr.rel (0) target = $region49
    $region48: #{tpu_custom_call.1} parent=1 // pred_region
      %327 = vsyncadd [#allocation3], 0
      %s329 = sshll.u32 [#allocation2], 4
      %s330 = int_to_ptr.vmem [resolvable:$true] %s329
      %s331 = sshll.u32 %s11, 4
      %s332 = int_to_ptr.hbm [resolvable:$true] %s331
      %334 = dma.vmem_to_hbm [thread:$0]  %s330, 64, %s332, [#allocation3]
    $region49: #{tpu_custom_call.1} parent=1 // pred_fallthru
      _
    // Predicated region
    $region50: #{tpu_custom_call.1} parent=1 // pred_check
      _
    $region51: #{tpu_custom_call.1} parent=1 // pred_check_branch
      %336 = sbr.rel (0) target = $region53
    $region52: #{tpu_custom_call.1} parent=1 // pred_region
      %338 = vsyncadd [#allocation5], 0
      %s340 = sshll.u32 [#allocation4], 4
      %s341 = int_to_ptr.vmem [resolvable:$true] %s340
      %s342 = sshll.u32 %s12, 4
      %s343 = int_to_ptr.hbm [resolvable:$true] %s342
      %345 = dma.vmem_to_hbm [thread:$0]  %s341, 128, %s343, [#allocation5]
    $region53: #{tpu_custom_call.1} parent=1 // pred_fallthru
      _
    // Predicated region
    $region54: #{tpu_custom_call.1} parent=1 // pred_check
      _
    $region55: #{tpu_custom_call.1} parent=1 // pred_check_branch
      %347 = sbr.rel (0) target = $region57
    $region56: #{tpu_custom_call.1} parent=1 // pred_region
      _
    $region57: #{tpu_custom_call.1} parent=1 // pred_fallthru
      _
    // Predicated region
    $region58: #{tpu_custom_call.1} parent=1 // pred_check
      _
    $region59: #{tpu_custom_call.1} parent=1 // pred_check_branch
      %349 = sbr.rel (0) target = $region61
    $region60: #{tpu_custom_call.1} parent=1 // pred_region
      %351 = dma.done [#allocation3], 64
    $region61: #{tpu_custom_call.1} parent=1 // pred_fallthru
      _
    // Predicated region
    $region62: #{tpu_custom_call.1} parent=1 // pred_check
      _
    $region63: #{tpu_custom_call.1} parent=1 // pred_check_branch
      %353 = sbr.rel (0) target = $region65
    $region64: #{tpu_custom_call.1} parent=1 // pred_region
      %355 = dma.done [#allocation5], 128
    $region65: #{tpu_custom_call.1} parent=1 // pred_fallthru
      _
    // Predicated region
    $region66: #{tpu_custom_call.1} parent=1 // pred_check
      _
    $region67: #{tpu_custom_call.1} parent=1 // pred_check_branch
      %357 = sbr.rel (0) target = $region69
    $region68: #{tpu_custom_call.1} parent=1 // pred_region
      _
    $region69: #{tpu_custom_call.1} parent=1 // pred_fallthru
      _
    %358 = vsyncpa [#allocation3], 1
    %359 = vsyncpa [#allocation5], 1

// kernel: tpu_custom_call.1
$region0: #{tpu_custom_call.1}
  #allocation0 [shape = 'u32[]', space=smem, size = 0x4, offset = 0x4, fixed_abs, tag = 'smem constant byte address 0x4 - core index']
  #allocation1 [shape = 'u32[72,128]{1,0:T(1,128)}', space=vmem, size = 0x9000, scoped, tag = 'internal scratch']
  %s0 = inlined_call_operand.vmem [shape: f32[4,8], index: 0, kind: input, shape index: {}]
  %s1 = inlined_call_operand.vmem [shape: f32[8,8], index: 1, kind: input, shape index: {}]
  %s2 = inlined_call_operand.vmem [shape: f32[16,8], index: 2, kind: input, shape index: {}]
  %s3 = inlined_call_operand.vmem [shape: bf16[8,4], index: 3, kind: input, shape index: {}]
  %s4 = inlined_call_operand.vmem [shape: f32[8,1], index: 4, kind: input, shape index: {}]
  %s5 = inlined_call_operand.vmem [shape: bf16[8,8], index: 5, kind: input, shape index: {}]
  %s6 = inlined_call_operand.vmem [shape: f32[8,1], index: 6, kind: input, shape index: {}]
  %s7 = inlined_call_operand.vmem [shape: bf16[16,8], index: 7, kind: input, shape index: {}]
  %s8 = inlined_call_operand.vmem [shape: f32[16,1], index: 8, kind: input, shape index: {}]
  %s9 = inlined_call_operand.vmem [shape: bf16[16,16], index: 9, kind: input, shape index: {}]
  %s10 = inlined_call_operand.vmem [shape: f32[16,1], index: 10, kind: input, shape index: {}]
  %s11 = inlined_call_operand.hbm [shape: f32[4,8], index: 11, kind: output, shape index: {0}]
  %s12 = inlined_call_operand.hbm [shape: f32[8,8], index: 12, kind: output, shape index: {1}]
  %s13 = inlined_call_operand.vmem [shape: f32[16,8], index: 13, kind: output, shape index: {2}]
  %14 = xla_tuple %s11, %s12, %s13
  %s15 = sld [smem:[#allocation0]]
  $region70: #{tpu_custom_call.1} parent=0
    _
  %s17 = ssub.s32 1, %s15
  %s18 = scalar_select 0, %s17, %s15
  $region1: #{tpu_custom_call.1} parent=0
    #allocation2 [shape = 'u8[2048]{0}', space=vmem, size = 0x800, scoped, tag = 'output window, operand 0, single buffered']
    #allocation3 [shape = 's32[1]{0}', space=sflag, size = 0x4, scoped, tag = 'scoped memory for tpu_custom_call.1']
    #allocation4 [shape = 'u8[4096]{0}', space=vmem, size = 0x1000, scoped, tag = 'output window, operand 1, single buffered']
    #allocation5 [shape = 's32[1]{0}', space=sflag, size = 0x4, scoped, tag = 'scoped memory for tpu_custom_call.1']
    %19 = vsyncpa [#allocation3], 0
    %20 = vsyncpa [#allocation5], 0
    // Predicated region
    $region2: #{tpu_custom_call.1} parent=1 // pred_check
      _
    $region3: #{tpu_custom_call.1} parent=1 // pred_check_branch
      %22 = sbr.rel (0) target = $region5
    $region4: #{tpu_custom_call.1} parent=1 // pred_region
      _
    $region5: #{tpu_custom_call.1} parent=1 // pred_fallthru
      _
    // Predicated region
    $region6: #{tpu_custom_call.1} parent=1 // pred_check
      _
    $region7: #{tpu_custom_call.1} parent=1 // pred_check_branch
      %24 = sbr.rel (0) target = $region9
    $region8: #{tpu_custom_call.1} parent=1 // pred_region
      _
    $region9: #{tpu_custom_call.1} parent=1 // pred_fallthru
      _
    // Predicated region
    $region10: #{tpu_custom_call.1} parent=1 // pred_check
      _
    $region11: #{tpu_custom_call.1} parent=1 // pred_check_branch
      %26 = sbr.rel (0) target = $region13
    $region12: #{tpu_custom_call.1} parent=1 // pred_region
      _
    $region13: #{tpu_custom_call.1} parent=1 // pred_fallthru
      _
    // Predicated region
    $region14: #{tpu_custom_call.1} parent=1 // pred_check
      _
    $region15: #{tpu_custom_call.1} parent=1 // pred_check_branch
      %28 = sbr.rel (0) target = $region17
    $region16: #{tpu_custom_call.1} parent=1 // pred_region
      _
    $region17: #{tpu_custom_call.1} parent=1 // pred_fallthru
      _
    // Predicated region
    $region18: #{tpu_custom_call.1} parent=1 // pred_check
      _
    $region19: #{tpu_custom_call.1} parent=1 // pred_check_branch
      %30 = sbr.rel (0) target = $region21
    $region20: #{tpu_custom_call.1} parent=1 // pred_region
      _
    $region21: #{tpu_custom_call.1} parent=1 // pred_fallthru
      _
    // Predicated region
    $region22: #{tpu_custom_call.1} parent=1 // pred_check
      _
    $region23: #{tpu_custom_call.1} parent=1 // pred_check_branch
      %32 = sbr.rel (0) target = $region25
    $region24: #{tpu_custom_call.1} parent=1 // pred_region
      _
    $region25: #{tpu_custom_call.1} parent=1 // pred_fallthru
      _
    // Predicated region
    $region26: #{tpu_custom_call.1} parent=1 // pred_check
      _
    $region27: #{tpu_custom_call.1} parent=1 // pred_check_branch
      %34 = sbr.rel (0) target = $region29
    $region28: #{tpu_custom_call.1} parent=1 // pred_region
      _
    $region29: #{tpu_custom_call.1} parent=1 // pred_fallthru
      _
    // Predicated region
    $region30: #{tpu_custom_call.1} parent=1 // pred_check
      _
    $region31: #{tpu_custom_call.1} parent=1 // pred_check_branch
      %36 = sbr.rel (0) target = $region33
    $region32: #{tpu_custom_call.1} parent=1 // pred_region
      _
    $region33: #{tpu_custom_call.1} parent=1 // pred_fallthru
      _
    // Predicated region
    $region34: #{tpu_custom_call.1} parent=1 // pred_check
      _
    $region35: #{tpu_custom_call.1} parent=1 // pred_check_branch
      %38 = sbr.rel (0) target = $region37
    $region36: #{tpu_custom_call.1} parent=1 // pred_region
      _
    $region37: #{tpu_custom_call.1} parent=1 // pred_fallthru
      _
    // Predicated region
    $region38: #{tpu_custom_call.1} parent=1 // pred_check
      _
    $region39: #{tpu_custom_call.1} parent=1 // pred_check_branch
      %40 = sbr.rel (0) target = $region41
    $region40: #{tpu_custom_call.1} parent=1 // pred_region
      _
    $region41: #{tpu_custom_call.1} parent=1 // pred_fallthru
      _
    // Predicated region
    $region42: #{tpu_custom_call.1} parent=1 // pred_check
      _
    $region43: #{tpu_custom_call.1} parent=1 // pred_check_branch
      %42 = sbr.rel (0) target = $region45
    $region44: #{tpu_custom_call.1} parent=1 // pred_region
      _
    $region45: #{tpu_custom_call.1} parent=1 // pred_fallthru
      _
    %v44 = vld [vmem:[%s0] sm:$0xf]
    %vm45 = vcmask 60416
    %46 = vst.msk [vmem:[#allocation2] sm:$0xf] %vm45, %v44
    %v47 = vld [vmem:[%s3] sm:$0xf]
    %v48 = vld [vmem:[%s4] sm:$0xff]
    %v49 = vld [vmem:[%s5] sm:$0xf]
    %v50 = vld [vmem:[%s6] sm:$0xff]
    %v51 = vpack.c.bf16 %v44, %v44
    %53 = vset.pattern.permute.xlu0 0
    %54 = vperm.xlu0 %53, %v48
    %v55 = vpop.permute.xlu0 %54
    %vm57 = vcmask 31744
    %v59 = vsel %vm57, %v47, 0
    %vm61 = vcmask 1041408
    %v63 = vsel %vm61, %v51, 0
    %65 = vmatpush.bf16.msra.mxu0 0
    %66 = vmatpush.bf16.msra.mxu0 0
    %67 = vmatpush.bf16.msra.mxu0 0
    %68 = vmatpush.bf16.msra.mxu0 0
    %69 = vmatpush.bf16.msra.mxu0 0
    %70 = vmatpush.bf16.msra.mxu0 0
    %71 = vmatpush.bf16.msra.mxu0 0
    %72 = vmatpush.bf16.msra.mxu0 %v63
    %73 = vmatmul.bf16.gmra.mxu0 %v59
    %v74 = vpop.f32.mrf.mxu0
    %v75 = vadd.f32 %v55, %v74
    %v76 = vpop.f32.mrf.mxu0
    %77 = vdwg.mxu0
    %v78 = vmul.f32 %v75, 0.5
    %v79 = vmul.f32 %v75, 0.70710677
    %v80 = vmul.f32 %v79, %v79
    %v81 = vmin.f32 16.0, %v80
    %v82 = vmul.f32 %v81, 2.1237322e-06
    %v83 = vadd.f32 %v82, 0.00028619796
    %v84 = vmul.f32 %v81, %v83
    %v85 = vadd.f32 %v84, 0.0036580483
    %v86 = vmul.f32 %v81, %v85
    %v87 = vadd.f32 %v86, 0.05243302
    %v88 = vmul.f32 %v81, %v87
    %v89 = vadd.f32 %v88, 0.18741608
    %v90 = vmul.f32 %v81, %v89
    %v91 = vadd.f32 %v90, 1.1283791
    %v92 = vmul.f32 %v79, %v91
    %v93 = vmul.f32 %v81, 3.8918573e-05
    %v94 = vadd.f32 %v93, 0.001143296
    %v95 = vmul.f32 %v81, %v94
    %v96 = vadd.f32 %v95, 0.014752088
    %v97 = vmul.f32 %v81, %v96
    %v98 = vadd.f32 %v97, 0.112945676
    %v99 = vmul.f32 %v81, %v98
    %v100 = vadd.f32 %v99, 0.4994258
    %v101 = vmul.f32 %v81, %v100
    %v102 = vadd.f32 %v101, 1.0
    %v103 = vrcp.pop %v102
    %v104 = vmul.f32 %v102, %v103
    %v105 = vsub.f32 1.0, %v104
    %v106 = vmul.f32 %v103, %v105
    %v107 = vadd.f32 %v103, %v106
    %vm108 = vweird.f32 %v102
    %vm109 = vweird.f32 %v103
    %vm110 = vmor %vm108, %vm109
    %v111 = vsel %vm110, %v103, %v107
    %v112 = vand.u32 2147483647, %v102
    %vm113 = vcmp.eq.f32.partialorder %v112, 8.507059e+37
    %v114 = vand.u32 %v102, 2147483648
    %v115 = vor.u32 1.1754944e-38, %v114
    %v116 = vsel %vm113, %v115, %v111
    %v117 = vmul.f32 %v92, %v116
    %v118 = vmin.f32 %v117, 1.0
    %v119 = vmax.f32 %v118, -1.0
    %v120 = vadd.f32 %v119, 1.0
    %v121 = vmul.f32 %v78, %v120
    %v122 = vpack.c.bf16 %v121, %v121
    %124 = vset.pattern.permute.xlu0 0
    %125 = vperm.xlu0 %124, %v50
    %v126 = vpop.permute.xlu0 %125
    %vm128 = vcmask 64512
    %v130 = vsel %vm128, %v49, 0
    %vm132 = vcmask 1043456
    %v134 = vsel %vm132, %v122, 0
    %136 = vmatpush.bf16.msra.mxu0 0
    %137 = vmatpush.bf16.msra.mxu0 0
    %138 = vmatpush.bf16.msra.mxu0 0
    %139 = vmatpush.bf16.msra.mxu0 0
    %140 = vmatpush.bf16.msra.mxu0 0
    %141 = vmatpush.bf16.msra.mxu0 0
    %142 = vmatpush.bf16.msra.mxu0 0
    %143 = vmatpush.bf16.msra.mxu0 %v134
    %144 = vmatmul.bf16.gmra.mxu0 %v130
    %v145 = vpop.f32.mrf.mxu0
    %v146 = vadd.f32 %v126, %v145
    %v147 = vpop.f32.mrf.mxu0
    %148 = vdwg.mxu0
    %v149 = vld [vmem:[%s1] sm:$0xff]
    %v150 = vadd.f32 %v149, %v146
    %151 = vst.msk [vmem:[#allocation4] sm:$0xff] %vm128, %v150
    %v152 = vld [vmem:[%s7] sm:$0xf]
    %v153 = vld [vmem:[%s7 + $0x4] sm:$0xf]
    %v154 = vld [vmem:[%s8] sm:$0xff]
    %v155 = vld [vmem:[%s8 + $0x8] sm:$0xff]
    %v156 = vld [vmem:[%s9] sm:$0xf]
    %v157 = vld [vmem:[%s9 + $0x4] sm:$0xf]
    %v158 = vld [vmem:[%s10] sm:$0xff]
    %v159 = vld [vmem:[%s10 + $0x8] sm:$0xff]
    %v160 = vpack.c.bf16 %v150, %v150
    %162 = vset.pattern.permute.xlu0 0
    %163 = vperm.xlu0 %162, %v154
    %v164 = vpop.permute.xlu0 %163
    %167 = vset.pattern.permute.xlu0 0
    %168 = vperm.xlu0 %167, %v155
    %v169 = vpop.permute.xlu0 %168
    %v173 = vunpack.c.l.b16 %v152
    %v174 = vunpack.c.l.b16 %v153
    %v175 = vpack.c.b16 %v174, %v173
    %v177 = vsel %vm128, %v175, 0
    %v180 = vsel %vm132, %v160, 0
    %182 = vmatpush.bf16.msra.mxu0 0
    %183 = vmatpush.bf16.msra.mxu0 0
    %184 = vmatpush.bf16.msra.mxu0 0
    %185 = vmatpush.bf16.msra.mxu0 0
    %186 = vmatpush.bf16.msra.mxu0 0
    %187 = vmatpush.bf16.msra.mxu0 0
    %188 = vmatpush.bf16.msra.mxu0 0
    %189 = vmatpush.bf16.msra.mxu0 %v180
    %190 = vmatmul.bf16.gmra.mxu0 %v177
    %v191 = vpop.f32.mrf.mxu0
    %v192 = vadd.f32 %v164, %v191
    %v193 = vpop.f32.mrf.mxu0
    %v194 = vadd.f32 %v169, %v193
    %195 = vdwg.mxu0
    %v196 = vmul.f32 %v192, 0.5
    %v197 = vmul.f32 %v194, 0.5
    %v198 = vmul.f32 %v192, 0.70710677
    %v199 = vmul.f32 %v194, 0.70710677
    %v200 = vmul.f32 %v198, %v198
    %v201 = vmin.f32 16.0, %v200
    %v202 = vmul.f32 %v201, 2.1237322e-06
    %v203 = vadd.f32 %v202, 0.00028619796
    %v204 = vmul.f32 %v201, %v203
    %v205 = vadd.f32 %v204, 0.0036580483
    %v206 = vmul.f32 %v201, %v205
    %v207 = vadd.f32 %v206, 0.05243302
    %v208 = vmul.f32 %v201, %v207
    %v209 = vadd.f32 %v208, 0.18741608
    %v210 = vmul.f32 %v201, %v209
    %v211 = vadd.f32 %v210, 1.1283791
    %v212 = vmul.f32 %v198, %v211
    %v213 = vmul.f32 %v201, 3.8918573e-05
    %v214 = vadd.f32 %v213, 0.001143296
    %v215 = vmul.f32 %v201, %v214
    %v216 = vadd.f32 %v215, 0.014752088
    %v217 = vmul.f32 %v201, %v216
    %v218 = vadd.f32 %v217, 0.112945676
    %v219 = vmul.f32 %v201, %v218
    %v220 = vadd.f32 %v219, 0.4994258
    %v221 = vmul.f32 %v201, %v220
    %v222 = vadd.f32 %v221, 1.0
    %v223 = vrcp.pop %v222
    %v224 = vmul.f32 %v222, %v223
    %v225 = vsub.f32 1.0, %v224
    %v226 = vmul.f32 %v223, %v225
    %v227 = vadd.f32 %v223, %v226
    %vm228 = vweird.f32 %v222
    %vm229 = vweird.f32 %v223
    %vm230 = vmor %vm228, %vm229
    %v231 = vsel %vm230, %v223, %v227
    %v232 = vand.u32 2147483647, %v222
    %vm233 = vcmp.eq.f32.partialorder %v232, 8.507059e+37
    %v234 = vand.u32 %v222, 2147483648
    %v235 = vor.u32 1.1754944e-38, %v234
    %v236 = vsel %vm233, %v235, %v231
    %v237 = vmul.f32 %v212, %v236
    %v238 = vmin.f32 %v237, 1.0
    %v239 = vmax.f32 %v238, -1.0
    %v240 = vmul.f32 %v199, %v199
    %v241 = vmin.f32 16.0, %v240
    %v242 = vmul.f32 %v241, 2.1237322e-06
    %v243 = vadd.f32 %v242, 0.00028619796
    %v244 = vmul.f32 %v241, %v243
    %v245 = vadd.f32 %v244, 0.0036580483
    %v246 = vmul.f32 %v241, %v245
    %v247 = vadd.f32 %v246, 0.05243302
    %v248 = vmul.f32 %v241, %v247
    %v249 = vadd.f32 %v248, 0.18741608
    %v250 = vmul.f32 %v241, %v249
    %v251 = vadd.f32 %v250, 1.1283791
    %v252 = vmul.f32 %v199, %v251
    %v253 = vmul.f32 %v241, 3.8918573e-05
    %v254 = vadd.f32 %v253, 0.001143296
    %v255 = vmul.f32 %v241, %v254
    %v256 = vadd.f32 %v255, 0.014752088
    %v257 = vmul.f32 %v241, %v256
    %v258 = vadd.f32 %v257, 0.112945676
    %v259 = vmul.f32 %v241, %v258
    %v260 = vadd.f32 %v259, 0.4994258
    %v261 = vmul.f32 %v241, %v260
    %v262 = vadd.f32 %v261, 1.0
    %v263 = vrcp.pop %v262
    %v264 = vmul.f32 %v262, %v263
    %v265 = vsub.f32 1.0, %v264
    %v266 = vmul.f32 %v263, %v265
    %v267 = vadd.f32 %v263, %v266
    %vm268 = vweird.f32 %v262
    %vm269 = vweird.f32 %v263
    %vm270 = vmor %vm268, %vm269
    %v271 = vsel %vm270, %v263, %v267
    %v272 = vand.u32 2147483647, %v262
    %vm273 = vcmp.eq.f32.partialorder %v272, 8.507059e+37
    %v274 = vand.u32 %v262, 2147483648
    %v275 = vor.u32 1.1754944e-38, %v274
    %v276 = vsel %vm273, %v275, %v271
    %v277 = vmul.f32 %v252, %v276
    %v278 = vmin.f32 %v277, 1.0
    %v279 = vmax.f32 %v278, -1.0
    %v280 = vadd.f32 %v239, 1.0
    %v281 = vadd.f32 %v279, 1.0
    %v282 = vmul.f32 %v196, %v280
    %v283 = vmul.f32 %v197, %v281
    %v284 = vpack.c.bf16 %v283, %v282
    %286 = vset.pattern.permute.xlu0 0
    %287 = vperm.xlu0 %286, %v158
    %v288 = vpop.permute.xlu0 %287
    %291 = vset.pattern.permute.xlu0 0
    %292 = vperm.xlu0 %291, %v159
    %v293 = vpop.permute.xlu0 %292
    %v297 = vunpack.c.l.b16 %v156
    %v298 = vunpack.c.l.b16 %v157
    %v299 = vpack.c.b16 %v298, %v297
    %vm300 = vcmask 130048
    %v302 = vsel %vm300, %v299, 0
    %304 = vmatpush.bf16.msra.mxu0 0
    %305 = vmatpush.bf16.msra.mxu0 0
    %306 = vmatpush.bf16.msra.mxu0 0
    %307 = vmatpush.bf16.msra.mxu0 0
    %308 = vmatpush.bf16.msra.mxu0 0
    %309 = vmatpush.bf16.msra.mxu0 0
    %310 = vmatpush.bf16.msra.mxu0 0
    %311 = vmatpush.bf16.msra.mxu0 %v284
    %312 = vmatmul.bf16.gmra.mxu0 %v302
    %v313 = vpop.f32.mrf.mxu0
    %v314 = vadd.f32 %v288, %v313
    %v315 = vpop.f32.mrf.mxu0
    %v316 = vadd.f32 %v293, %v315
    %317 = vdwg.mxu0
    %v318 = vld [vmem:[%s2] sm:$0xff]
    %v319 = vld [vmem:[%s2 + $0x8] sm:$0xff]
    %v320 = vadd.f32 %v318, %v314
    %v321 = vadd.f32 %v319, %v316
    %322 = vst.msk [vmem:[%s13] sm:$0xff] %vm128, %v320
    %323 = vst.msk [vmem:[%s13 + $0x8] sm:$0xff] %vm128, %v321
    // Predicated region
    $region46: #{tpu_custom_call.1} parent=1 // pred_check
      _
    $region47: #{tpu_custom_call.1} parent=1 // pred_check_branch
      %325 = sbr.rel (0) target = $region49
    $region48: #{tpu_custom_call.1} parent=1 // pred_region
      %327 = vsyncadd [#allocation3], 0
      %s329 = sshll.u32 [#allocation2], 4
      %s330 = int_to_ptr.vmem [resolvable:$true] %s329
      %s331 = sshll.u32 %s11, 4
      %s332 = int_to_ptr.hbm [resolvable:$true] %s331
      %334 = dma.vmem_to_hbm [thread:$0]  %s330, 64, %s332, [#allocation3]
    $region49: #{tpu_custom_call.1} parent=1 // pred_fallthru
      _
    // Predicated region
    $region50: #{tpu_custom_call.1} parent=1 // pred_check
      _
    $region51: #{tpu_custom_call.1} parent=1 // pred_check_branch
      %336 = sbr.rel (0) target = $region53
    $region52: #{tpu_custom_call.1} parent=1 // pred_region
      %338 = vsyncadd [#allocation5], 0
      %s340 = sshll.u32 [#allocation4], 4
      %s341 = int_to_ptr.vmem [resolvable:$true] %s340
      %s342 = sshll.u32 %s12, 4
      %s343 = int_to_ptr.hbm [resolvable:$true] %s342
      %345 = dma.vmem_to_hbm [thread:$0]  %s341, 128, %s343, [#allocation5]
    $region53: #{tpu_custom_call.1} parent=1 // pred_fallthru
      _
    // Predicated region
    $region54: #{tpu_custom_call.1} parent=1 // pred_check
      _
    $region55: #{tpu_custom_call.1} parent=1 // pred_check_branch
      %347 = sbr.rel (0) target = $region57
    $region56: #{tpu_custom_call.1} parent=1 // pred_region
      _
    $region57: #{tpu_custom_call.1} parent=1 // pred_fallthru
      _
    // Predicated region
    $region58: #{tpu_custom_call.1} parent=1 // pred_check
      _
    $region59: #{tpu_custom_call.1} parent=1 // pred_check_branch
      %349 = sbr.rel (0) target = $region61
    $region60: #{tpu_custom_call.1} parent=1 // pred_region
      %351 = dma.done [#allocation3], 64
    $region61: #{tpu_custom_call.1} parent=1 // pred_fallthru
      _
    // Predicated region
    $region62: #{tpu_custom_call.1} parent=1 // pred_check
      _
    $region63: #{tpu_custom_call.1} parent=1 // pred_check_branch
      %353 = sbr.rel (0) target = $region65
    $region64: #{tpu_custom_call.1} parent=1 // pred_region
      %355 = dma.done [#allocation5], 128
    $region65: #{tpu_custom_call.1} parent=1 // pred_fallthru
      _
    // Predicated region
    $region66: #{tpu_custom_call.1} parent=1 // pred_check
      _
    $region67: #{tpu_custom_call.1} parent=1 // pred_check_branch
      %357 = sbr.rel (0) target = $region69
    $region68: #{tpu_custom_call.1} parent=1 // pred_region
      _
    $region69: #{tpu_custom_call.1} parent=1 // pred_fallthru
      _
    %358 = vsyncpa [#allocation3], 1
    %359 = vsyncpa [#allocation5], 1

</llo_original>
